<compile_context>
chip_gen: v6e
topology: v6e:2x2x1
jax: 0.10.0
libtpu: 0.0.40
codegen_flags: <defaults>
</compile_context>

<pallas_src>
import math
import jax
import jax.numpy as jnp
from jax.experimental import pallas as pl
from jax.experimental.pallas import tpu as pltpu

_INV_SQRT2 = 0.7071067811865476


def _round_up(x, m):
    return ((x + m - 1) // m) * m


def _cdiv(a, b):
    return (a + b - 1) // b


def _gelu_exact(h):
    # Exact (erf-based) GELU in f32, matching PyTorch's default nn.GELU().
    return 0.5 * h * (1.0 + jax.lax.erf(h * _INV_SQRT2))


# ---------------------------------------------------------------------------
# Kernels
# ---------------------------------------------------------------------------
def _expert_kernel_fused(x_ref, w1_ref, b1_ref, w2_ref, b2_ref, o_ref):
    # Full hidden dim per step: no reduction axis, no accumulator.
    # x_ref: (tm, dp) bf16   w1_ref: (dp, Hp) bf16   b1_ref: (1, Hp) f32
    # w2_ref: (Hp, dp) bf16  b2_ref: (1, dp) f32     o_ref: (tm, dp) f32
    h = jnp.dot(x_ref[...], w1_ref[...], preferred_element_type=jnp.float32)
    h = _gelu_exact(h + b1_ref[...])
    o_ref[...] = (
        jnp.dot(h.astype(jnp.bfloat16), w2_ref[...],
                preferred_element_type=jnp.float32)
        + b2_ref[...]
    )


def _expert_kernel_tiled(x_ref, w1_ref, b1_ref, w2_ref, b2_ref, o_ref):
    # 2-D grid: (token tiles [parallel], hidden slabs [arbitrary/reduction]).
    # The f32 output block index is constant across the h axis, so it stays
    # VMEM-resident and is used directly as the accumulator (no scratch).
    h_idx = pl.program_id(1)

    @pl.when(h_idx == 0)
    def _init():
        # Fold b2 into the accumulator init (added exactly once).
        o_ref[...] = jnp.broadcast_to(b2_ref[...], o_ref.shape)

    h = jnp.dot(x_ref[...], w1_ref[...], preferred_element_type=jnp.float32)
    h = _gelu_exact(h + b1_ref[...])
    o_ref[...] += jnp.dot(h.astype(jnp.bfloat16), w2_ref[...],
                          preferred_element_type=jnp.float32)


# ---------------------------------------------------------------------------
# Hardware query / tile budgeting
# ---------------------------------------------------------------------------
def _tpu_vmem_and_cores():
    """Return (VMEM capacity in bytes, #TensorCores per chip) with safe fallbacks."""
    cap = None
    cores = 1
    try:
        cap = int(pltpu.get_tpu_info().vmem_capacity_bytes)
    except Exception:
        cap = None
    kind = ""
    try:
        kind = jax.devices()[0].device_kind.lower()
    except Exception:
        kind = ""
    if "v7" in kind:
        cores = 2
        if cap is None:
            cap = 64 * 1024 * 1024
    if cap is None:
        cap = 64 * 1024 * 1024  # conservative default (works everywhere)
    return cap, cores


def _fast_vmem_bytes(tm, dp, Hp):
    # Double-buffered x/out + full bf16 weights (also counted x2) + biases
    # + (tm, Hp) f32 GELU intermediate headroom.
    return (2 * tm * dp * 2          # x bf16
            + 2 * dp * Hp * 2        # w1 bf16
            + 2 * Hp * dp * 2        # w2 bf16
            + 2 * Hp * 4 + 2 * dp * 4
            + 2 * tm * dp * 4        # out f32
            + tm * Hp * 4)


def _tiled_vmem_bytes(tm, th, dp):
    return (2 * tm * dp * 2          # x bf16
            + 2 * dp * th * 2        # w1 slab bf16
            + 2 * th * dp * 2        # w2 slab bf16
            + 2 * th * 4 + 2 * dp * 4
            + 2 * tm * dp * 4        # out f32 (accumulator)
            + tm * th * 4)           # GELU intermediate headroom


# ---------------------------------------------------------------------------
# Parameter prep (call ONCE) + forward
# ---------------------------------------------------------------------------
def prepare_expert_params(w1, b1, w2, b2):
    """Pad feature dims to 128-lane multiples and cast weights to bf16 once.

    w1: (d, H), b1: (H,), w2: (H, d), b2: (d,)  (already x @ W layout).
    """
    d, H = w1.shape
    dp = _round_up(d, 128)
    Hp = _round_up(H, 128)
    # Padded hidden units see b1=0 -> gelu(0)=0 and zero w2 rows, so they
    # contribute nothing; padded feature columns are sliced away after the call.
    w1_p = jnp.pad(w1, ((0, dp - d), (0, Hp - H))).astype(jnp.bfloat16)
    b1_p = jnp.pad(b1, (0, Hp - H)).reshape(1, Hp).astype(jnp.float32)
    w2_p = jnp.pad(w2, ((0, Hp - H), (0, dp - d))).astype(jnp.bfloat16)
    b2_p = jnp.pad(b2, (0, dp - d)).reshape(1, dp).astype(jnp.float32)
    return dict(w1=w1_p, b1=b1_p, w2=w2_p, b2=b2_p, d=d, H=H, dp=dp, Hp=Hp)


def expert_forward(x, params, *, force_tiled=False):
    """x: (..., d) -> (..., d); equivalent to Expert.forward in eval mode."""
    orig_shape = x.shape
    d, dp, Hp = params["d"], params["dp"], params["Hp"]
    assert orig_shape[-1] == d, "feature dim mismatch"

    x2d = x.reshape(-1, d)
    N = x2d.shape[0]

    cap, cores = _tpu_vmem_and_cores()
    vmem_limit = int(cap * 0.75)
    budget = int(vmem_limit * 0.85)

    # --- token tile ---------------------------------------------------------
    tm_target = 512 if cap >= 128 * 1024 * 1024 else 256
    tm = min(tm_target, _round_up(N, 8))
    if cores >= 2 and N > 8:
        # Keep >=2 token tiles so the parallel axis spans both TensorCores.
        tm = min(tm, max(8, _round_up(_cdiv(N, 2), 8)))
    tm = max(8, _round_up(tm, 8))
    # Shrink tm until at least the smallest hidden slab fits the VMEM budget.
    while tm > 8 and _tiled_vmem_bytes(tm, 128, dp) > budget:
        tm = max(8, _round_up(tm // 2, 8))

    Np = _round_up(N, tm)
    n_i = Np // tm

    # x: cast to bf16 once in the wrapper (halves DMA + VMEM for the x tile).
    x_p = jnp.pad(x2d.astype(jnp.bfloat16), ((0, Np - N), (0, dp - d)))

    flops = 4 * Np * dp * Hp                    # two matmuls
    transcendentals = Np * Hp                   # erf

    use_fast = (not force_tiled) and _fast_vmem_bytes(tm, dp, Hp) <= budget

    if use_fast:
        cost = pl.CostEstimate(
            flops=flops, transcendentals=transcendentals,
            bytes_accessed=Np * dp * 2 + Np * dp * 4 + 4 * dp * Hp + 4 * Hp + 4 * dp)
        out = pl.pallas_call(
            _expert_kernel_fused,
            out_shape=jax.ShapeDtypeStruct((Np, dp), jnp.float32),
            grid_spec=pltpu.PrefetchScalarGridSpec(
                num_scalar_prefetch=0,
                grid=(n_i,),
                in_specs=[
                    pl.BlockSpec((tm, dp), lambda i: (i, 0)),   # x tile
                    pl.BlockSpec((dp, Hp), lambda i: (0, 0)),   # full w1
                    pl.BlockSpec((1, Hp), lambda i: (0, 0)),    # b1
                    pl.BlockSpec((Hp, dp), lambda i: (0, 0)),   # full w2
                    pl.BlockSpec((1, dp), lambda i: (0, 0)),    # b2
                ],
                out_specs=pl.BlockSpec((tm, dp), lambda i: (i, 0)),
            ),
            compiler_params=pltpu.CompilerParams(
                dimension_semantics=("parallel",),
                vmem_limit_bytes=vmem_limit,
            ),
            cost_estimate=cost,
        )(x_p, params["w1"], params["b1"], params["w2"], params["b2"])
    else:
        # Pick the largest hidden slab that divides Hp and fits the budget.
        th = 128
        for cand in (2048, 1024, 512, 384, 256):
            if cand <= Hp and Hp % cand == 0 and _tiled_vmem_bytes(tm, cand, dp) <= budget:
                th = cand
                break
        n_h = Hp // th
        cost = pl.CostEstimate(
            flops=flops, transcendentals=transcendentals,
            bytes_accessed=Np * dp * 2 + Np * dp * 4 + n_i * 4 * dp * Hp + 4 * Hp + 4 * dp)
        out = pl.pallas_call(
            _expert_kernel_tiled,
            out_shape=jax.ShapeDtypeStruct((Np, dp), jnp.float32),
            grid_spec=pltpu.PrefetchScalarGridSpec(
                num_scalar_prefetch=0,
                grid=(n_i, n_h),
                in_specs=[
                    pl.BlockSpec((tm, dp), lambda i, h: (i, 0)),   # x tile
                    pl.BlockSpec((dp, th), lambda i, h: (0, h)),   # w1 slab
                    pl.BlockSpec((1, th), lambda i, h: (0, h)),    # b1 slice
                    pl.BlockSpec((th, dp), lambda i, h: (h, 0)),   # w2 slab
                    pl.BlockSpec((1, dp), lambda i, h: (0, 0)),    # b2
                ],
                out_specs=pl.BlockSpec((tm, dp), lambda i, h: (i, 0)),
            ),
            compiler_params=pltpu.CompilerParams(
                dimension_semantics=("parallel", "arbitrary"),
                vmem_limit_bytes=vmem_limit,
            ),
            cost_estimate=cost,
        )(x_p, params["w1"], params["b1"], params["w2"], params["b2"])

    return out[:N, :d].astype(x.dtype).reshape(orig_shape)


def init_expert_params(key, d):
    """Deterministic init mimicking nn.Linear's uniform(-1/sqrt(fan_in), +)."""
    H = 4 * d
    k1, k2, k3, k4 = jax.random.split(key, 4)
    bound1 = 1.0 / math.sqrt(d)
    bound2 = 1.0 / math.sqrt(H)
    # Stored already transposed for x @ W layout (PyTorch stores (out, in)).
    w1 = jax.random.uniform(k1, (d, H), jnp.float32, -bound1, bound1)
    b1 = jax.random.uniform(k2, (H,), jnp.float32, -bound1, bound1)
    w2 = jax.random.uniform(k3, (H, d), jnp.float32, -bound2, bound2)
    b2 = jax.random.uniform(k4, (d,), jnp.float32, -bound2, bound2)
    return w1, b1, w2, b2


if __name__ == "__main__":
    B, S, d = 2, 8, 32          # hidden_dim = 4*d = 128
    key = jax.random.PRNGKey(0)
    kx, kp = jax.random.split(key)
    x = jax.random.normal(kx, (B, S, d), jnp.float32)
    w1, b1, w2, b2 = init_expert_params(kp, d)
    params = prepare_expert_params(w1, b1, w2, b2)   # pad + bf16 cast, ONCE

    # Reference in plain JAX (f32) to sanity-check the kernel (bf16 MXU tolerance).
    h_ref = x.reshape(-1, d) @ w1 + b1
    h_ref = 0.5 * h_ref * (1.0 + jax.lax.erf(h_ref / jnp.sqrt(2.0)))
    y_ref = (h_ref @ w2 + b2).reshape(B, S, d)

    # Fast (non-reduction) path.
    out = jax.block_until_ready(expert_forward(x, params))
    assert out.shape == y_ref.shape
    assert jnp.allclose(out, y_ref, atol=2e-2, rtol=2e-2), "fast path mismatch"

    # Tiled (hidden-reduction) path, exercised explicitly for coverage.
    out_t = jax.block_until_ready(expert_forward(x, params, force_tiled=True))
    assert jnp.allclose(out_t, y_ref, atol=2e-2, rtol=2e-2), "tiled path mismatch"

    print("KERNEL_OK")
</pallas_src>

<mosaic_0001>
module attributes {stable_mosaic.version = 11 : i64} {
  func.func @_expert_kernel_fused(%arg0: i32, %arg1: memref<16x128xbf16, #tpu.memory_space<vmem>>, %arg2: memref<128x128xbf16, #tpu.memory_space<vmem>>, %arg3: memref<1x128xf32, #tpu.memory_space<vmem>>, %arg4: memref<128x128xbf16, #tpu.memory_space<vmem>>, %arg5: memref<1x128xf32, #tpu.memory_space<vmem>>, %arg6: memref<16x128xf32, #tpu.memory_space<vmem>>) attributes {dimension_semantics = [#tpu.dimension_semantics<parallel>], iteration_bounds = array<i64: 1>, scalar_prefetch = 0 : i64, scratch_operands = 0 : i64, tpu.core_type = #tpu.core_type<tc>, window_params = [{transform_indices = @transform_0, window_bounds = array<i64: 16, 128>}, {pipeline_mode = #tpu.pipeline_mode<synchronous>, transform_indices = @transform_1, window_bounds = array<i64: 128, 128>}, {pipeline_mode = #tpu.pipeline_mode<synchronous>, transform_indices = @transform_2, window_bounds = array<i64: 1, 128>}, {pipeline_mode = #tpu.pipeline_mode<synchronous>, transform_indices = @transform_3, window_bounds = array<i64: 128, 128>}, {pipeline_mode = #tpu.pipeline_mode<synchronous>, transform_indices = @transform_4, window_bounds = array<i64: 1, 128>}, {transform_indices = @transform_5, window_bounds = array<i64: 16, 128>}]} {
    %c0 = arith.constant 0 : index
    %c0_0 = arith.constant 0 : index
    %0 = vector.load %arg1[%c0, %c0_0] : memref<16x128xbf16, #tpu.memory_space<vmem>>, vector<16x128xbf16>
    %c0_1 = arith.constant 0 : index
    %c0_2 = arith.constant 0 : index
    %1 = vector.load %arg2[%c0_1, %c0_2] : memref<128x128xbf16, #tpu.memory_space<vmem>>, vector<128x128xbf16>
    %cst = arith.constant dense<0.000000e+00> : vector<16x128xf32>
    %2 = tpu.matmul %0, %1, %cst {dimension_numbers = #tpu.dot_dimension_numbers<[1], [0], [0], [1], [0, 0, 1, 1], [], []>} : vector<16x128xbf16>, vector<128x128xbf16>, vector<16x128xf32> -> vector<16x128xf32>
    %c0_3 = arith.constant 0 : index
    %c0_4 = arith.constant 0 : index
    %3 = vector.load %arg3[%c0_3, %c0_4] : memref<1x128xf32, #tpu.memory_space<vmem>>, vector<1x128xf32>
    %4 = vector.broadcast %3 : vector<1x128xf32> to vector<16x128xf32>
    %5 = arith.addf %2, %4 : vector<16x128xf32>
    %cst_5 = arith.constant 5.000000e-01 : f32
    %6 = vector.broadcast %cst_5 : f32 to vector<16x128xf32>
    %7 = arith.mulf %6, %5 : vector<16x128xf32>
    %cst_6 = arith.constant 0.707106769 : f32
    %8 = vector.broadcast %cst_6 : f32 to vector<16x128xf32>
    %9 = arith.mulf %5, %8 : vector<16x128xf32>
    %10 = math.erf %9 : vector<16x128xf32>
    %cst_7 = arith.constant 1.000000e+00 : f32
    %11 = vector.broadcast %cst_7 : f32 to vector<16x128xf32>
    %12 = arith.addf %11, %10 : vector<16x128xf32>
    %13 = arith.mulf %7, %12 : vector<16x128xf32>
    %14 = arith.truncf %13 : vector<16x128xf32> to vector<16x128xbf16>
    %c0_8 = arith.constant 0 : index
    %c0_9 = arith.constant 0 : index
    %15 = vector.load %arg4[%c0_8, %c0_9] : memref<128x128xbf16, #tpu.memory_space<vmem>>, vector<128x128xbf16>
    %cst_10 = arith.constant dense<0.000000e+00> : vector<16x128xf32>
    %16 = tpu.matmul %14, %15, %cst_10 {dimension_numbers = #tpu.dot_dimension_numbers<[1], [0], [0], [1], [0, 0, 1, 1], [], []>} : vector<16x128xbf16>, vector<128x128xbf16>, vector<16x128xf32> -> vector<16x128xf32>
    %c0_11 = arith.constant 0 : index
    %c0_12 = arith.constant 0 : index
    %17 = vector.load %arg5[%c0_11, %c0_12] : memref<1x128xf32, #tpu.memory_space<vmem>>, vector<1x128xf32>
    %18 = vector.broadcast %17 : vector<1x128xf32> to vector<16x128xf32>
    %19 = arith.addf %16, %18 : vector<16x128xf32>
    %c0_13 = arith.constant 0 : index
    %c0_14 = arith.constant 0 : index
    %20 = vector.load %arg6[%c0_13, %c0_14] : memref<16x128xf32, #tpu.memory_space<vmem>>, vector<16x128xf32>
    tpu.vector_store %arg6[%c0_13, %c0_14], %19 {strides = array<i32>} : memref<16x128xf32, #tpu.memory_space<vmem>>, vector<16x128xf32>,
    return
  }
  func.func @transform_0(%arg0: i32) -> (i32, i32) {
    %c0_i32 = arith.constant 0 : i32
    %c0_i32_0 = arith.constant 0 : i32
    return %arg0, %c0_i32 : i32, i32
  }
  func.func @transform_1(%arg0: i32) -> (i32, i32) {
    %c0_i32 = arith.constant 0 : i32
    %c0_i32_0 = arith.constant 0 : i32
    %c0_i32_1 = arith.constant 0 : i32
    return %c0_i32, %c0_i32_0 : i32, i32
  }
  func.func @transform_2(%arg0: i32) -> (i32, i32) {
    %c0_i32 = arith.constant 0 : i32
    %c0_i32_0 = arith.constant 0 : i32
    %c0_i32_1 = arith.constant 0 : i32
    return %c0_i32, %c0_i32_0 : i32, i32
  }
  func.func @transform_3(%arg0: i32) -> (i32, i32) {
    %c0_i32 = arith.constant 0 : i32
    %c0_i32_0 = arith.constant 0 : i32
    %c0_i32_1 = arith.constant 0 : i32
    return %c0_i32, %c0_i32_0 : i32, i32
  }
  func.func @transform_4(%arg0: i32) -> (i32, i32) {
    %c0_i32 = arith.constant 0 : i32
    %c0_i32_0 = arith.constant 0 : i32
    %c0_i32_1 = arith.constant 0 : i32
    return %c0_i32, %c0_i32_0 : i32, i32
  }
  func.func @transform_5(%arg0: i32) -> (i32, i32) {
    %c0_i32 = arith.constant 0 : i32
    %c0_i32_0 = arith.constant 0 : i32
    return %arg0, %c0_i32 : i32, i32
  }
}

</mosaic_0001>

<llo_original>
// kernel: tpu_custom_call.1
$region0: #{tpu_custom_call.1}
  #allocation0 [shape = 'u32[]', space=smem, size = 0x4, offset = 0x4, fixed_abs, tag = 'smem constant byte address 0x4 - core index']
  #allocation1 [shape = 'u32[144,128]{1,0:T(1,128)}', space=vmem, size = 0x12000, scoped, tag = 'internal scratch']
  %s0 = inlined_call_operand.hbm [shape: bf16[16,128], index: 0, kind: input, shape index: {}]
  %s1 = inlined_call_operand.hbm [shape: bf16[128,128], index: 1, kind: input, shape index: {}]
  %s2 = inlined_call_operand.vmem [shape: f32[1,128], index: 2, kind: input, shape index: {}]
  %s3 = inlined_call_operand.hbm [shape: bf16[128,128], index: 3, kind: input, shape index: {}]
  %s4 = inlined_call_operand.vmem [shape: f32[1,128], index: 4, kind: input, shape index: {}]
  %s5 = inlined_call_operand.hbm [shape: f32[16,128], index: 5, kind: output, shape index: {}]
  %s6 = sld [smem:[#allocation0]]
  $region42: #{tpu_custom_call.1} parent=0
    _
  %s8 = ssub.s32 1, %s6
  %s9 = scalar_select 0, %s8, %s6
  $region1: #{tpu_custom_call.1} parent=0
    #allocation2 [shape = 'u8[4096]{0}', space=vmem, size = 0x1000, scoped, tag = 'input window, operand 0, single buffered']
    #allocation3 [shape = 's32[1]{0}', space=sflag, size = 0x4, scoped, tag = 'scoped memory for tpu_custom_call.1']
    #allocation4 [shape = 's32[1]{0}', space=sflag, size = 0x4, scoped, tag = 'scoped memory for tpu_custom_call.1']
    #allocation5 [shape = 'u8[32768]{0}', space=vmem, size = 0x8000, scoped, tag = 'input window, operand 1, single buffered']
    #allocation6 [shape = 's32[1]{0}', space=sflag, size = 0x4, scoped, tag = 'scoped memory for tpu_custom_call.1']
    #allocation7 [shape = 'u8[32768]{0}', space=vmem, size = 0x8000, scoped, tag = 'input window, operand 3, single buffered']
    #allocation8 [shape = 'u8[8192]{0}', space=vmem, size = 0x2000, scoped, tag = 'output window, operand 0, single buffered']
    %10 = vsyncpa [#allocation3], 0
    %11 = vsyncpa [#allocation6], 0
    %12 = vsyncpa [#allocation4], 0
    // Predicated region
    $region2: #{tpu_custom_call.1} parent=1 // pred_check
      _
    $region3: #{tpu_custom_call.1} parent=1 // pred_check_branch
      %14 = sbr.rel (0) target = $region5
    $region4: #{tpu_custom_call.1} parent=1 // pred_region
      %s16 = ssub.s32 128, 128
      %17 = vsyncadd [#allocation3], %s16
      %s18 = sshll.u32 [#allocation2], 4
      %s19 = int_to_ptr.vmem [resolvable:$true] %s18
      %24 = dma.hbm_to_vmem [thread:$0]  %s0, 128, %s19, [#allocation3], 64, 64, 4
    $region5: #{tpu_custom_call.1} parent=1 // pred_fallthru
      _
    // Predicated region
    $region6: #{tpu_custom_call.1} parent=1 // pred_check
      _
    $region7: #{tpu_custom_call.1} parent=1 // pred_check_branch
      %26 = sbr.rel (0) target = $region9
    $region8: #{tpu_custom_call.1} parent=1 // pred_region
      %s28 = ssub.s32 1024, 1024
      %29 = vsyncadd [#allocation6], %s28
      %s30 = sshll.u32 [#allocation5], 4
      %s31 = int_to_ptr.vmem [resolvable:$true] %s30
      %36 = dma.hbm_to_vmem [thread:$0]  %s1, 1024, %s31, [#allocation6], 64, 64, 4
    $region9: #{tpu_custom_call.1} parent=1 // pred_fallthru
      _
    // Predicated region
    $region10: #{tpu_custom_call.1} parent=1 // pred_check
      _
    $region11: #{tpu_custom_call.1} parent=1 // pred_check_branch
      %38 = sbr.rel (0) target = $region13
    $region12: #{tpu_custom_call.1} parent=1 // pred_region
      _
    $region13: #{tpu_custom_call.1} parent=1 // pred_fallthru
      _
    // Predicated region
    $region14: #{tpu_custom_call.1} parent=1 // pred_check
      _
    $region15: #{tpu_custom_call.1} parent=1 // pred_check_branch
      %40 = sbr.rel (0) target = $region17
    $region16: #{tpu_custom_call.1} parent=1 // pred_region
      %s42 = ssub.s32 1024, 1024
      %43 = vsyncadd [#allocation6], %s42
      %s44 = sshll.u32 [#allocation7], 4
      %s45 = int_to_ptr.vmem [resolvable:$true] %s44
      %50 = dma.hbm_to_vmem [thread:$0]  %s3, 1024, %s45, [#allocation6], 64, 64, 4
    $region17: #{tpu_custom_call.1} parent=1 // pred_fallthru
      _
    // Predicated region
    $region18: #{tpu_custom_call.1} parent=1 // pred_check
      _
    $region19: #{tpu_custom_call.1} parent=1 // pred_check_branch
      %52 = sbr.rel (0) target = $region21
    $region20: #{tpu_custom_call.1} parent=1 // pred_region
      _
    $region21: #{tpu_custom_call.1} parent=1 // pred_fallthru
      _
    // Predicated region
    $region22: #{tpu_custom_call.1} parent=1 // pred_check
      _
    $region23: #{tpu_custom_call.1} parent=1 // pred_check_branch
      %54 = sbr.rel (0) target = $region25
    $region24: #{tpu_custom_call.1} parent=1 // pred_region
      %55 = dma.done [#allocation3], 128
    $region25: #{tpu_custom_call.1} parent=1 // pred_fallthru
      _
    // Predicated region
    $region26: #{tpu_custom_call.1} parent=1 // pred_check
      _
    $region27: #{tpu_custom_call.1} parent=1 // pred_check_branch
      %57 = sbr.rel (0) target = $region29
    $region28: #{tpu_custom_call.1} parent=1 // pred_region
      %58 = dma.done [#allocation6], 1024
    $region29: #{tpu_custom_call.1} parent=1 // pred_fallthru
      _
    // Predicated region
    $region30: #{tpu_custom_call.1} parent=1 // pred_check
      _
    $region31: #{tpu_custom_call.1} parent=1 // pred_check_branch
      %60 = sbr.rel (0) target = $region33
    $region32: #{tpu_custom_call.1} parent=1 // pred_region
      %61 = dma.done [#allocation6], 1024
    $region33: #{tpu_custom_call.1} parent=1 // pred_fallthru
      _
    %v63 = vld [vmem:[#allocation2] sm:$0xf]
    %v64 = vld [vmem:[#allocation2 + $0x4] sm:$0xf]
    %v65 = vld [vmem:[#allocation5] sm:$0xf]
    %v66 = vld [vmem:[#allocation5 + $0x4] sm:$0xf]
    %v67 = vld [vmem:[#allocation5 + $0x8] sm:$0xf]
    %v68 = vld [vmem:[#allocation5 + $0xc] sm:$0xf]
    %v69 = vld [vmem:[#allocation5 + $0x10] sm:$0xf]
    %v70 = vld [vmem:[#allocation5 + $0x14] sm:$0xf]
    %v71 = vld [vmem:[#allocation5 + $0x18] sm:$0xf]
    %v72 = vld [vmem:[#allocation5 + $0x1c] sm:$0xf]
    %v73 = vld [vmem:[#allocation5 + $0x20] sm:$0xf]
    %v74 = vld [vmem:[#allocation5 + $0x24] sm:$0xf]
    %v75 = vld [vmem:[#allocation5 + $0x28] sm:$0xf]
    %v76 = vld [vmem:[#allocation5 + $0x2c] sm:$0xf]
    %v77 = vld [vmem:[#allocation5 + $0x30] sm:$0xf]
    %v78 = vld [vmem:[#allocation5 + $0x34] sm:$0xf]
    %v79 = vld [vmem:[#allocation5 + $0x38] sm:$0xf]
    %v80 = vld [vmem:[#allocation5 + $0x3c] sm:$0xf]
    %v81 = vld [vmem:[%s2] sm:$0x1]
    %v83 = vlaneseq
    %v84 = vshrl.u32 %v83, 7
    %v85 = vsub.s32 0, %v84
    %v86 = vrot.slane %v81, %v85
    %v90 = vunpack.c.l.b16 %v63
    %v91 = vunpack.c.l.b16 %v64
    %v92 = vpack.c.b16 %v91, %v90
    %v110 = vunpack.c.l.b16 %v65
    %v111 = vunpack.c.l.b16 %v66
    %v112 = vunpack.c.l.b16 %v67
    %v113 = vunpack.c.l.b16 %v68
    %v114 = vunpack.c.l.b16 %v69
    %v115 = vunpack.c.l.b16 %v70
    %v116 = vunpack.c.l.b16 %v71
    %v117 = vunpack.c.l.b16 %v72
    %v118 = vunpack.c.l.b16 %v73
    %v119 = vunpack.c.l.b16 %v74
    %v120 = vunpack.c.l.b16 %v75
    %v121 = vunpack.c.l.b16 %v76
    %v122 = vunpack.c.l.b16 %v77
    %v123 = vunpack.c.l.b16 %v78
    %v124 = vunpack.c.l.b16 %v79
    %v125 = vunpack.c.l.b16 %v80
    %v126 = vpack.c.b16 %v111, %v110
    %v127 = vpack.c.b16 %v113, %v112
    %v128 = vpack.c.b16 %v115, %v114
    %v129 = vpack.c.b16 %v117, %v116
    %v130 = vpack.c.b16 %v119, %v118
    %v131 = vpack.c.b16 %v121, %v120
    %v132 = vpack.c.b16 %v123, %v122
    %v133 = vpack.c.b16 %v125, %v124
    %142 = vmatprep.subr.bf16.mxu0 0
    %143 = vmatpush1.bf16.msra.mxu0 %v133
    %144 = vmatprep.subr.bf16.mxu0 0
    %145 = vmatpush1.bf16.msra.mxu0 %v132
    %146 = vmatprep.subr.bf16.mxu0 0
    %147 = vmatpush1.bf16.msra.mxu0 %v131
    %148 = vmatprep.subr.bf16.mxu0 0
    %149 = vmatpush1.bf16.msra.mxu0 %v130
    %150 = vmatprep.subr.bf16.mxu0 0
    %151 = vmatpush1.bf16.msra.mxu0 %v129
    %152 = vmatprep.subr.bf16.mxu0 0
    %153 = vmatpush1.bf16.msra.mxu0 %v128
    %154 = vmatprep.subr.bf16.mxu0 0
    %155 = vmatpush1.bf16.msra.mxu0 %v127
    %156 = vmatprep.subr.bf16.mxu0 0
    %157 = vmatpush1.bf16.msra.mxu0 %v126
    %158 = vmatprep.subr.bf16.mxu0 0
    %159 = vmatpush2.bf16.msra.mxu0 0
    %160 = vmatprep.subr.bf16.mxu0 0
    %161 = vmatpush2.bf16.msra.mxu0 0
    %162 = vmatprep.subr.bf16.mxu0 0
    %163 = vmatpush2.bf16.msra.mxu0 0
    %164 = vmatprep.subr.bf16.mxu0 0
    %165 = vmatpush2.bf16.msra.mxu0 0
    %166 = vmatprep.subr.bf16.mxu0 0
    %167 = vmatpush2.bf16.msra.mxu0 0
    %168 = vmatprep.subr.bf16.mxu0 0
    %169 = vmatpush2.bf16.msra.mxu0 0
    %170 = vmatprep.subr.bf16.mxu0 0
    %171 = vmatpush2.bf16.msra.mxu0 0
    %172 = vmatprep.subr.bf16.mxu0 0
    %173 = vmatpush2.bf16.msra.mxu0 0
    %174 = vmatprep.mubr.bf16.mxu0 0
    %175 = vmatmul.mubr.bf16.gmra.mxu0 %v92
    %v176 = vpop.f32.mrf.mxu0
    %v177 = vadd.f32 %v86, %v176
    %v178 = vpop.f32.mrf.mxu0
    %v179 = vpop.f32.mrf.mxu0
    %v180 = vadd.f32 %v86, %v179
    %v181 = vpop.f32.mrf.mxu0
    %182 = vdwg.mxu0
    %v183 = vmul.f32 %v177, 0.5
    %v184 = vmul.f32 %v180, 0.5
    %v185 = vmul.f32 %v177, 0.70710677
    %v186 = vmul.f32 %v180, 0.70710677
    %v187 = verf.f32.pop %v185
    %v188 = verf.f32.pop %v186
    %v189 = vadd.f32 %v187, 1.0
    %v190 = vadd.f32 %v188, 1.0
    %v191 = vmul.f32 %v183, %v189
    %v192 = vmul.f32 %v184, %v190
    %v193 = vpack.c.bf16 %v192, %v191
    %v194 = vld [vmem:[#allocation7] sm:$0xf]
    %v195 = vld [vmem:[#allocation7 + $0x4] sm:$0xf]
    %v196 = vld [vmem:[#allocation7 + $0x8] sm:$0xf]
    %v197 = vld [vmem:[#allocation7 + $0xc] sm:$0xf]
    %v198 = vld [vmem:[#allocation7 + $0x10] sm:$0xf]
    %v199 = vld [vmem:[#allocation7 + $0x14] sm:$0xf]
    %v200 = vld [vmem:[#allocation7 + $0x18] sm:$0xf]
    %v201 = vld [vmem:[#allocation7 + $0x1c] sm:$0xf]
    %v202 = vld [vmem:[#allocation7 + $0x20] sm:$0xf]
    %v203 = vld [vmem:[#allocation7 + $0x24] sm:$0xf]
    %v204 = vld [vmem:[#allocation7 + $0x28] sm:$0xf]
    %v205 = vld [vmem:[#allocation7 + $0x2c] sm:$0xf]
    %v206 = vld [vmem:[#allocation7 + $0x30] sm:$0xf]
    %v207 = vld [vmem:[#allocation7 + $0x34] sm:$0xf]
    %v208 = vld [vmem:[#allocation7 + $0x38] sm:$0xf]
    %v209 = vld [vmem:[#allocation7 + $0x3c] sm:$0xf]
    %v210 = vld [vmem:[%s4] sm:$0x1]
    %v212 = vlaneseq
    %v213 = vshrl.u32 %v212, 7
    %v214 = vsub.s32 0, %v213
    %v215 = vrot.slane %v210, %v214
    %v233 = vunpack.c.l.b16 %v194
    %v234 = vunpack.c.l.b16 %v195
    %v235 = vunpack.c.l.b16 %v196
    %v236 = vunpack.c.l.b16 %v197
    %v237 = vunpack.c.l.b16 %v198
    %v238 = vunpack.c.l.b16 %v199
    %v239 = vunpack.c.l.b16 %v200
    %v240 = vunpack.c.l.b16 %v201
    %v241 = vunpack.c.l.b16 %v202
    %v242 = vunpack.c.l.b16 %v203
    %v243 = vunpack.c.l.b16 %v204
    %v244 = vunpack.c.l.b16 %v205
    %v245 = vunpack.c.l.b16 %v206
    %v246 = vunpack.c.l.b16 %v207
    %v247 = vunpack.c.l.b16 %v208
    %v248 = vunpack.c.l.b16 %v209
    %v249 = vpack.c.b16 %v234, %v233
    %v250 = vpack.c.b16 %v236, %v235
    %v251 = vpack.c.b16 %v238, %v237
    %v252 = vpack.c.b16 %v240, %v239
    %v253 = vpack.c.b16 %v242, %v241
    %v254 = vpack.c.b16 %v244, %v243
    %v255 = vpack.c.b16 %v246, %v245
    %v256 = vpack.c.b16 %v248, %v247
    %265 = vmatprep.subr.bf16.mxu0 0
    %266 = vmatpush1.bf16.msra.mxu0 %v256
    %267 = vmatprep.subr.bf16.mxu0 0
    %268 = vmatpush1.bf16.msra.mxu0 %v255
    %269 = vmatprep.subr.bf16.mxu0 0
    %270 = vmatpush1.bf16.msra.mxu0 %v254
    %271 = vmatprep.subr.bf16.mxu0 0
    %272 = vmatpush1.bf16.msra.mxu0 %v253
    %273 = vmatprep.subr.bf16.mxu0 0
    %274 = vmatpush1.bf16.msra.mxu0 %v252
    %275 = vmatprep.subr.bf16.mxu0 0
    %276 = vmatpush1.bf16.msra.mxu0 %v251
    %277 = vmatprep.subr.bf16.mxu0 0
    %278 = vmatpush1.bf16.msra.mxu0 %v250
    %279 = vmatprep.subr.bf16.mxu0 0
    %280 = vmatpush1.bf16.msra.mxu0 %v249
    %281 = vmatprep.subr.bf16.mxu0 0
    %282 = vmatpush2.bf16.msra.mxu0 0
    %283 = vmatprep.subr.bf16.mxu0 0
    %284 = vmatpush2.bf16.msra.mxu0 0
    %285 = vmatprep.subr.bf16.mxu0 0
    %286 = vmatpush2.bf16.msra.mxu0 0
    %287 = vmatprep.subr.bf16.mxu0 0
    %288 = vmatpush2.bf16.msra.mxu0 0
    %289 = vmatprep.subr.bf16.mxu0 0
    %290 = vmatpush2.bf16.msra.mxu0 0
    %291 = vmatprep.subr.bf16.mxu0 0
    %292 = vmatpush2.bf16.msra.mxu0 0
    %293 = vmatprep.subr.bf16.mxu0 0
    %294 = vmatpush2.bf16.msra.mxu0 0
    %295 = vmatprep.subr.bf16.mxu0 0
    %296 = vmatpush2.bf16.msra.mxu0 0
    %297 = vmatprep.mubr.bf16.mxu0 0
    %298 = vmatmul.mubr.bf16.gmra.mxu0 %v193
    %v299 = vpop.f32.mrf.mxu0
    %v300 = vadd.f32 %v215, %v299
    %v301 = vpop.f32.mrf.mxu0
    %v302 = vpop.f32.mrf.mxu0
    %v303 = vadd.f32 %v215, %v302
    %v304 = vpop.f32.mrf.mxu0
    %305 = vdwg.mxu0
    %306 = vst [vmem:[#allocation8] sm:$0xff] %v300
    %307 = vst [vmem:[#allocation8 + $0x8] sm:$0xff] %v303
    // Predicated region
    $region34: #{tpu_custom_call.1} parent=1 // pred_check
      _
    $region35: #{tpu_custom_call.1} parent=1 // pred_check_branch
      %309 = sbr.rel (0) target = $region37
    $region36: #{tpu_custom_call.1} parent=1 // pred_region
      %s311 = ssub.s32 256, 256
      %312 = vsyncadd [#allocation4], %s311
      %s313 = sshll.u32 [#allocation8], 4
      %s314 = int_to_ptr.vmem [resolvable:$true] %s313
      %319 = dma.vmem_to_hbm [thread:$0]  %s314, 256, %s5, [#allocation4], 128, 128, 8
    $region37: #{tpu_custom_call.1} parent=1 // pred_fallthru
      _
    // Predicated region
    $region38: #{tpu_custom_call.1} parent=1 // pred_check
      _
    $region39: #{tpu_custom_call.1} parent=1 // pred_check_branch
      %321 = sbr.rel (0) target = $region41
    $region40: #{tpu_custom_call.1} parent=1 // pred_region
      %322 = dma.done [#allocation4], 256
    $region41: #{tpu_custom_call.1} parent=1 // pred_fallthru
      _
    %323 = vsyncpa [#allocation3], 1
    %324 = vsyncpa [#allocation6], 1
    %325 = vsyncpa [#allocation4], 1

</llo_original>
